<compile_context>
chip_gen: v7x
topology: tpu7x:2x2x1
jax: 0.10.0
libtpu: 0.0.40
codegen_flags: <defaults>
</compile_context>

<pallas_src>
import numpy as np
import jax
import jax.numpy as jnp
from jax import lax
from jax.experimental import pallas as pl
from jax.experimental.pallas import tpu as pltpu

BN_EPS = 1e-5
LANE = 128

_CPARAMS = pltpu.CompilerParams(
    dimension_semantics=("parallel",),     # tiles are independent -> megacore on v7x
    vmem_limit_bytes=48 * 1024 * 1024,     # fits v7x's 64 MiB physical VMEM
)


# --------------------------------------------------------------------------
# small helpers
# --------------------------------------------------------------------------
def _rup(x, m):
    return ((x + m - 1) // m) * m


def _pad_tail(a, tail):
    """Zero-pad the trailing len(tail) dims of `a` up to `tail`."""
    nd = a.ndim
    pads = [(0, 0)] * (nd - len(tail)) + [
        (0, t - s) for s, t in zip(a.shape[nd - len(tail):], tail)]
    return jnp.pad(a, pads)


def _cost(flops, nbytes):
    return pl.CostEstimate(flops=int(flops), transcendentals=0,
                           bytes_accessed=int(nbytes))


def _tile_spec(tm, c):
    return pl.BlockSpec((tm, c), lambda t: (t, 0))


def _full_spec(shape):
    return pl.BlockSpec(shape, lambda t, _nd=len(shape): (0,) * _nd)


def _stats_spec(c):
    return pl.BlockSpec((1, 2, c), lambda t: (t, 0, 0))


def _choose_imgs_per_tile(n_imgs, rows_per_img, max_rows):
    """Largest divisor of n_imgs whose row-tile is <= max_rows and 8-aligned."""
    best = None
    for d in range(1, n_imgs + 1):
        if n_imgs % d:
            continue
        tm = d * rows_per_img
        if tm % 8 == 0 and tm <= max_rows:
            best = d
    return best if best is not None else n_imgs   # fallback: single full tile


def _bn_affine(stats, gamma, beta, m):
    """Reduce per-tile (sum, sumsq) partial stats -> BN scale/shift (1, C)."""
    s = jnp.sum(stats[:, 0, :], axis=0)
    ss = jnp.sum(stats[:, 1, :], axis=0)
    mu = s / m
    var = jnp.maximum(ss / m - mu * mu, 0.0)
    scale = gamma * lax.rsqrt(var + BN_EPS)
    shift = beta - mu * scale
    return scale[None, :], shift[None, :]


def _partial_stats(z):
    s = jnp.sum(z, axis=0, keepdims=True)
    ss = jnp.sum(z * z, axis=0, keepdims=True)
    return jnp.concatenate([s, ss], axis=0)[None]


# --------------------------------------------------------------------------
# multi-tile kernels (per-tile partial BN stats, reduced on host)
# --------------------------------------------------------------------------
def _mm_stats_kernel(x_ref, w_ref, z_ref, st_ref):
    """1x1 conv as matmul (bf16 operands, f32 acc) + per-tile BN partial stats."""
    z = jnp.dot(x_ref[...].astype(jnp.bfloat16), w_ref[...],
                preferred_element_type=jnp.float32)
    z_ref[...] = z
    st_ref[...] = _partial_stats(z)


def _conv1_proj_kernel(x_ref, w1_ref, wp_ref, z1_ref, zp_ref, st1_ref, stp_ref):
    """conv1 (1x1) and the 1x1 projection share one read of x."""
    xb = x_ref[...].astype(jnp.bfloat16)
    z1 = jnp.dot(xb, w1_ref[...], preferred_element_type=jnp.float32)
    zp = jnp.dot(xb, wp_ref[...], preferred_element_type=jnp.float32)
    z1_ref[...] = z1
    zp_ref[...] = zp
    st1_ref[...] = _partial_stats(z1)
    stp_ref[...] = _partial_stats(zp)


def _bn_relu_mm_stats_kernel(z_in_ref, sc_ref, sh_ref, w_ref, z_ref, st_ref):
    """h = relu(bn(z_in)); z = h @ w; emit z + per-tile BN partial stats."""
    h = jnp.maximum(z_in_ref[...] * sc_ref[...] + sh_ref[...], 0.0)
    z = jnp.dot(h.astype(jnp.bfloat16), w_ref[...],
                preferred_element_type=jnp.float32)
    z_ref[...] = z
    st_ref[...] = _partial_stats(z)


def _conv3x3_taps(h1, w2_ref, pad_ref, rows, ho, wo, halo):
    """3x3/stride-1/pad-1 conv over `rows` flattened image rows via 9 taps."""
    hw = ho * wo
    pad_ref[pl.ds(halo, rows), :] = h1
    r = lax.broadcasted_iota(jnp.int32, (rows, 1), 0) % hw
    i, j = r // wo, r % wo
    acc = jnp.zeros_like(h1)
    for k in range(9):
        dy, dx = k // 3 - 1, k % 3 - 1
        valid = ((i + dy >= 0) & (i + dy < ho) &
                 (j + dx >= 0) & (j + dx < wo))
        tap = pad_ref[pl.ds(halo + dy * wo + dx, rows), :]     # static slice
        tap = jnp.where(valid, tap, 0.0).astype(jnp.bfloat16)
        acc = acc + jnp.dot(tap, w2_ref[k], preferred_element_type=jnp.float32)
    return acc


def _make_conv2_kernel(tm, ho, wo, halo):
    """Multi-tile 3x3 conv kernel on (tm, mid) rows (tile = whole images)."""
    def kernel(z1_ref, sc_ref, sh_ref, w2_ref, z2_ref, st_ref, pad_ref):
        h1 = jnp.maximum(z1_ref[...] * sc_ref[...] + sh_ref[...], 0.0)
        acc = _conv3x3_taps(h1, w2_ref, pad_ref, tm, ho, wo, halo)
        z2_ref[...] = acc
        st_ref[...] = _partial_stats(acc)
    return kernel


def _fuse_proj_kernel(z3_ref, sc3_ref, sh3_ref, zp_ref, scp_ref, shp_ref, out_ref):
    out_ref[...] = jnp.maximum(
        z3_ref[...] * sc3_ref[...] + sh3_ref[...]
        + zp_ref[...] * scp_ref[...] + shp_ref[...], 0.0)


def _fuse_id_kernel(z3_ref, sc3_ref, sh3_ref, x_ref, out_ref):
    out_ref[...] = jnp.maximum(
        z3_ref[...] * sc3_ref[...] + sh3_ref[...] + x_ref[...], 0.0)


# --------------------------------------------------------------------------
# fully-fused single-call kernel (whole problem in one VMEM-resident tile)
# --------------------------------------------------------------------------
def _make_fused_block_kernel(m, ho, wo, halo, has_projection):
    inv_m = 1.0 / float(m)

    def bn(z, g_ref, be_ref, relu):
        g, be = g_ref[...], be_ref[...]
        mu = jnp.sum(z, axis=0, keepdims=True) * inv_m
        var = jnp.maximum(jnp.sum(z * z, axis=0, keepdims=True) * inv_m - mu * mu, 0.0)
        scale = g * lax.rsqrt(var + BN_EPS)
        y = z * scale + (be - mu * scale)
        return jnp.maximum(y, 0.0) if relu else y

    if has_projection:
        def kernel(x_ref, w1_ref, w2_ref, w3_ref, wp_ref,
                   g1_ref, be1_ref, g2_ref, be2_ref, g3_ref, be3_ref,
                   gp_ref, bep_ref, out_ref, pad_ref):
            xb = x_ref[...].astype(jnp.bfloat16)
            h1 = bn(jnp.dot(xb, w1_ref[...], preferred_element_type=jnp.float32),
                    g1_ref, be1_ref, relu=True)
            h2 = bn(_conv3x3_taps(h1, w2_ref, pad_ref, m, ho, wo, halo),
                    g2_ref, be2_ref, relu=True)
            y3 = bn(jnp.dot(h2.astype(jnp.bfloat16), w3_ref[...],
                            preferred_element_type=jnp.float32),
                    g3_ref, be3_ref, relu=False)
            sp = bn(jnp.dot(xb, wp_ref[...], preferred_element_type=jnp.float32),
                    gp_ref, bep_ref, relu=False)
            out_ref[...] = jnp.maximum(y3 + sp, 0.0)
    else:
        def kernel(x_ref, w1_ref, w2_ref, w3_ref,
                   g1_ref, be1_ref, g2_ref, be2_ref, g3_ref, be3_ref,
                   out_ref, pad_ref):
            xb = x_ref[...].astype(jnp.bfloat16)
            h1 = bn(jnp.dot(xb, w1_ref[...], preferred_element_type=jnp.float32),
                    g1_ref, be1_ref, relu=True)
            h2 = bn(_conv3x3_taps(h1, w2_ref, pad_ref, m, ho, wo, halo),
                    g2_ref, be2_ref, relu=True)
            y3 = bn(jnp.dot(h2.astype(jnp.bfloat16), w3_ref[...],
                            preferred_element_type=jnp.float32),
                    g3_ref, be3_ref, relu=False)
            out_ref[...] = jnp.maximum(y3 + x_ref[...], 0.0)

    return kernel


# --------------------------------------------------------------------------
# forward wrapper
# --------------------------------------------------------------------------
def bottleneck_forward(x_nchw, params, c_in, c_out, max_tile_rows=1024):
    n, _, h, w = x_nchw.shape
    mid = c_out // 4
    stride = 2 if (c_in != c_out and c_in != mid) else 1
    has_projection = c_in != c_out

    cin_p, mid_p, cout_p = _rup(c_in, LANE), _rup(mid, LANE), _rup(c_out, LANE)

    # NCHW -> NHWC, fold the 1x1-conv stride into a spatial subsample, flatten.
    x = jnp.transpose(x_nchw, (0, 2, 3, 1)).astype(jnp.float32)[:, ::stride, ::stride, :]
    _, ho, wo, _ = x.shape
    m = n * ho * wo
    x2d = _pad_tail(x.reshape(m, c_in), (cin_p,))

    imgs_per_tile = _choose_imgs_per_tile(n, ho * wo, max_tile_rows)
    tm = imgs_per_tile * ho * wo
    n_tiles = n // imgs_per_tile
    halo = _rup(wo + 1, 8)

    # Weights: bf16 for the MXU, zero-padded channels.  Conv biases dropped
    # (exactly cancelled by the training-mode BN mean subtraction).
    w1 = _pad_tail(params['w1'], (cin_p, mid_p)).astype(jnp.bfloat16)
    w2 = _pad_tail(params['w2'].reshape(9, mid, mid), (mid_p, mid_p)).astype(jnp.bfloat16)
    w3 = _pad_tail(params['w3'], (mid_p, cout_p)).astype(jnp.bfloat16)

    g1, be1 = _pad_tail(params['g1'], (mid_p,)), _pad_tail(params['be1'], (mid_p,))
    g2, be2 = _pad_tail(params['g2'], (mid_p,)), _pad_tail(params['be2'], (mid_p,))
    g3, be3 = _pad_tail(params['g3'], (cout_p,)), _pad_tail(params['be3'], (cout_p,))
    if has_projection:
        wp = _pad_tail(params['wp'], (cin_p, cout_p)).astype(jnp.bfloat16)
        gp, bep = _pad_tail(params['gp'], (cout_p,)), _pad_tail(params['bep'], (cout_p,))

    # ======================================================================
    # Fully-fused single-call path: whole batch fits in one row tile, so BN
    # stats are global inside the kernel and nothing intermediate hits HBM.
    # ======================================================================
    if n_tiles == 1:
        fused = _make_fused_block_kernel(m, ho, wo, halo, has_projection)
        flops = 2 * m * (cin_p * mid_p + 9 * mid_p * mid_p + mid_p * cout_p)
        wbytes = 2 * (cin_p * mid_p + 9 * mid_p * mid_p + mid_p * cout_p)
        if has_projection:
            flops += 2 * m * cin_p * cout_p
            wbytes += 2 * cin_p * cout_p

        common_specs = [_full_spec((m, cin_p)), _full_spec((cin_p, mid_p)),
                        _full_spec((9, mid_p, mid_p)), _full_spec((mid_p, cout_p))]
        bn_specs = [_full_spec((1, mid_p))] * 4 + [_full_spec((1, cout_p))] * 2
        args = [x2d, w1, w2, w3]
        if has_projection:
            common_specs.append(_full_spec((cin_p, cout_p)))
            bn_specs += [_full_spec((1, cout_p))] * 2
            args.append(wp)
            args += [g1[None], be1[None], g2[None], be2[None],
                     g3[None], be3[None], gp[None], bep[None]]
        else:
            args += [g1[None], be1[None], g2[None], be2[None],
                     g3[None], be3[None]]

        out2d = pl.pallas_call(
            fused,
            grid=(1,),
            in_specs=common_specs + bn_specs,
            out_specs=_full_spec((m, cout_p)),
            out_shape=jax.ShapeDtypeStruct((m, cout_p), jnp.float32),
            scratch_shapes=[pltpu.VMEM((m + 2 * halo, mid_p), jnp.float32)],
            compiler_params=_CPARAMS,
            cost_estimate=_cost(flops, 4 * m * (cin_p + cout_p) + wbytes),
        )(*args)

        out = out2d[:, :c_out].reshape(n, ho, wo, c_out)
        return jnp.transpose(out, (0, 3, 1, 2))      # back to NCHW

    # ======================================================================
    # Multi-tile path: per-tile kernels emit partial BN stats; global stats
    # are reduced between calls (training-mode BN needs a cross-tile reduce).
    # ======================================================================
    # ---- conv1 (1x1) [+ projection, sharing the x read] ----------------------
    if has_projection:
        z1, zp, st1, stp = pl.pallas_call(
            _conv1_proj_kernel,
            grid=(n_tiles,),
            in_specs=[_tile_spec(tm, cin_p), _full_spec((cin_p, mid_p)),
                      _full_spec((cin_p, cout_p))],
            out_specs=(_tile_spec(tm, mid_p), _tile_spec(tm, cout_p),
                       _stats_spec(mid_p), _stats_spec(cout_p)),
            out_shape=(jax.ShapeDtypeStruct((m, mid_p), jnp.float32),
                       jax.ShapeDtypeStruct((m, cout_p), jnp.float32),
                       jax.ShapeDtypeStruct((n_tiles, 2, mid_p), jnp.float32),
                       jax.ShapeDtypeStruct((n_tiles, 2, cout_p), jnp.float32)),
            compiler_params=_CPARAMS,
            cost_estimate=_cost(2 * m * cin_p * (mid_p + cout_p),
                                4 * m * (cin_p + mid_p + cout_p)
                                + 2 * cin_p * (mid_p + cout_p)),
        )(x2d, w1, wp)
        scp, shp = _bn_affine(stp, gp, bep, m)
    else:
        z1, st1 = pl.pallas_call(
            _mm_stats_kernel,
            grid=(n_tiles,),
            in_specs=[_tile_spec(tm, cin_p), _full_spec((cin_p, mid_p))],
            out_specs=(_tile_spec(tm, mid_p), _stats_spec(mid_p)),
            out_shape=(jax.ShapeDtypeStruct((m, mid_p), jnp.float32),
                       jax.ShapeDtypeStruct((n_tiles, 2, mid_p), jnp.float32)),
            compiler_params=_CPARAMS,
            cost_estimate=_cost(2 * m * cin_p * mid_p,
                                4 * m * (cin_p + mid_p) + 2 * cin_p * mid_p),
        )(x2d, w1)
    sc1, sh1 = _bn_affine(st1, g1, be1, m)

    # ---- conv2 (3x3, pad 1): h1 = relu(bn1(z1)); 9 shifted taps; BN2 stats ----
    z2, st2 = pl.pallas_call(
        _make_conv2_kernel(tm, ho, wo, halo),
        grid=(n_tiles,),
        in_specs=[_tile_spec(tm, mid_p), _full_spec((1, mid_p)),
                  _full_spec((1, mid_p)), _full_spec((9, mid_p, mid_p))],
        out_specs=(_tile_spec(tm, mid_p), _stats_spec(mid_p)),
        out_shape=(jax.ShapeDtypeStruct((m, mid_p), jnp.float32),
                   jax.ShapeDtypeStruct((n_tiles, 2, mid_p), jnp.float32)),
        scratch_shapes=[pltpu.VMEM((tm + 2 * halo, mid_p), jnp.float32)],
        compiler_params=_CPARAMS,
        cost_estimate=_cost(2 * 9 * m * mid_p * mid_p,
                            8 * m * mid_p + 2 * 9 * mid_p * mid_p),
    )(z1, sc1, sh1, w2)
    sc2, sh2 = _bn_affine(st2, g2, be2, m)

    # ---- conv3 (1x1): h2 = relu(bn2(z2)); z3 = h2 @ w3; BN3 stats -------------
    z3, st3 = pl.pallas_call(
        _bn_relu_mm_stats_kernel,
        grid=(n_tiles,),
        in_specs=[_tile_spec(tm, mid_p), _full_spec((1, mid_p)),
                  _full_spec((1, mid_p)), _full_spec((mid_p, cout_p))],
        out_specs=(_tile_spec(tm, cout_p), _stats_spec(cout_p)),
        out_shape=(jax.ShapeDtypeStruct((m, cout_p), jnp.float32),
                   jax.ShapeDtypeStruct((n_tiles, 2, cout_p), jnp.float32)),
        compiler_params=_CPARAMS,
        cost_estimate=_cost(2 * m * mid_p * cout_p,
                            4 * m * (mid_p + cout_p) + 2 * mid_p * cout_p),
    )(z2, sc2, sh2, w3)
    sc3, sh3 = _bn_affine(st3, g3, be3, m)

    # ---- fuse: out = relu(bn3(z3) + shortcut) ---------------------------------
    if has_projection:
        out2d = pl.pallas_call(
            _fuse_proj_kernel,
            grid=(n_tiles,),
            in_specs=[_tile_spec(tm, cout_p), _full_spec((1, cout_p)),
                      _full_spec((1, cout_p)), _tile_spec(tm, cout_p),
                      _full_spec((1, cout_p)), _full_spec((1, cout_p))],
            out_specs=_tile_spec(tm, cout_p),
            out_shape=jax.ShapeDtypeStruct((m, cout_p), jnp.float32),
            compiler_params=_CPARAMS,
            cost_estimate=_cost(6 * m * cout_p, 12 * m * cout_p),
        )(z3, sc3, sh3, zp, scp, shp)
    else:
        out2d = pl.pallas_call(
            _fuse_id_kernel,
            grid=(n_tiles,),
            in_specs=[_tile_spec(tm, cout_p), _full_spec((1, cout_p)),
                      _full_spec((1, cout_p)), _tile_spec(tm, cout_p)],
            out_specs=_tile_spec(tm, cout_p),
            out_shape=jax.ShapeDtypeStruct((m, cout_p), jnp.float32),
            compiler_params=_CPARAMS,
            cost_estimate=_cost(4 * m * cout_p, 12 * m * cout_p),
        )(z3, sc3, sh3, x2d)

    out = out2d[:, :c_out].reshape(n, ho, wo, c_out)
    return jnp.transpose(out, (0, 3, 1, 2))      # back to NCHW


# --------------------------------------------------------------------------
# params + pure-JAX reference (mirrors the PyTorch module, training-mode BN)
# --------------------------------------------------------------------------
def init_params(key, c_in, c_out):
    mid = c_out // 4
    ks = jax.random.split(key, 8)
    sc = 0.1
    return dict(
        w1=sc * jax.random.normal(ks[0], (c_in, mid), jnp.float32),
        b1=sc * jax.random.normal(ks[1], (mid,), jnp.float32),
        w2=sc * jax.random.normal(ks[2], (3, 3, mid, mid), jnp.float32),   # HWIO
        b2=sc * jax.random.normal(ks[3], (mid,), jnp.float32),
        w3=sc * jax.random.normal(ks[4], (mid, c_out), jnp.float32),
        b3=sc * jax.random.normal(ks[5], (c_out,), jnp.float32),
        wp=sc * jax.random.normal(ks[6], (c_in, c_out), jnp.float32),
        bp=sc * jax.random.normal(ks[7], (c_out,), jnp.float32),
        g1=jnp.ones((mid,), jnp.float32), be1=jnp.zeros((mid,), jnp.float32),
        g2=jnp.ones((mid,), jnp.float32), be2=jnp.zeros((mid,), jnp.float32),
        g3=jnp.ones((c_out,), jnp.float32), be3=jnp.zeros((c_out,), jnp.float32),
        gp=jnp.ones((c_out,), jnp.float32), bep=jnp.zeros((c_out,), jnp.float32),
    )


def reference_forward(x_nchw, params, c_in, c_out):
    mid = c_out // 4
    stride = 2 if (c_in != c_out and c_in != mid) else 1
    has_projection = c_in != c_out
    x = jnp.transpose(x_nchw, (0, 2, 3, 1)).astype(jnp.float32)

    def conv1x1(inp, wmat, b, s):
        y = lax.conv_general_dilated(inp, wmat[None, None, :, :], (s, s), 'VALID',
                                     dimension_numbers=('NHWC', 'HWIO', 'NHWC'))
        return y + b

    def bn(z, g, be):
        mu = jnp.mean(z, axis=(0, 1, 2), keepdims=True)
        var = jnp.mean((z - mu) ** 2, axis=(0, 1, 2), keepdims=True)
        return (z - mu) * (g * lax.rsqrt(var + BN_EPS)) + be

    hh = jax.nn.relu(bn(conv1x1(x, params['w1'], params['b1'], stride),
                        params['g1'], params['be1']))
    hh = lax.conv_general_dilated(hh, params['w2'], (1, 1), 'SAME',
                                  dimension_numbers=('NHWC', 'HWIO', 'NHWC')) + params['b2']
    hh = jax.nn.relu(bn(hh, params['g2'], params['be2']))
    hh = bn(conv1x1(hh, params['w3'], params['b3'], 1), params['g3'], params['be3'])
    if has_projection:
        sc = bn(conv1x1(x, params['wp'], params['bp'], stride),
                params['gp'], params['bep'])
    else:
        sc = x[:, ::stride, ::stride, :]
    out = jax.nn.relu(sc + hh)
    return jnp.transpose(out, (0, 3, 1, 2))


if __name__ == "__main__":
    key = jax.random.PRNGKey(0)
    kx, kx2, kp1, kp2 = jax.random.split(key, 4)

    c_in, c_out = 8, 16                       # projection + stride-2 config
    x = jax.random.normal(kx, (2, c_in, 16, 16), jnp.float32)
    params = init_params(kp1, c_in, c_out)

    c_in2 = c_out2 = 16                       # identity shortcut, stride 1
    x2 = jax.random.normal(kx2, (2, c_in2, 8, 8), jnp.float32)
    params2 = init_params(kp2, c_in2, c_out2)

    # Config A: projection, multi-tile path (max_tile_rows=64 forces 2 tiles).
    out = jax.block_until_ready(
        bottleneck_forward(x, params, c_in, c_out, max_tile_rows=64))
    ref = reference_forward(x, params, c_in, c_out)
    assert out.shape == (2, c_out, 8, 8)
    np.testing.assert_allclose(np.asarray(out), np.asarray(ref), rtol=5e-2, atol=5e-2)

    # Config B: identity shortcut, fully-fused single-call path.
    out2 = jax.block_until_ready(bottleneck_forward(x2, params2, c_in2, c_out2))
    ref2 = reference_forward(x2, params2, c_in2, c_out2)
    assert out2.shape == (2, c_out2, 8, 8)
    np.testing.assert_allclose(np.asarray(out2), np.asarray(ref2), rtol=5e-2, atol=5e-2)

    # Config C: projection, fully-fused single-call path (default tile size).
    out3 = jax.block_until_ready(bottleneck_forward(x, params, c_in, c_out))
    np.testing.assert_allclose(np.asarray(out3), np.asarray(ref), rtol=5e-2, atol=5e-2)

    # Config D: identity shortcut, multi-tile path.
    out4 = jax.block_until_ready(
        bottleneck_forward(x2, params2, c_in2, c_out2, max_tile_rows=64))
    np.testing.assert_allclose(np.asarray(out4), np.asarray(ref2), rtol=5e-2, atol=5e-2)

    print("KERNEL_OK")
</pallas_src>

<mosaic_0001>
module attributes {stable_mosaic.version = 11 : i64} {
  func.func @_conv1_proj_kernel(%arg0: i32, %arg1: memref<64x128xf32, #tpu.memory_space<vmem>>, %arg2: memref<128x128xbf16, #tpu.memory_space<vmem>>, %arg3: memref<128x128xbf16, #tpu.memory_space<vmem>>, %arg4: memref<64x128xf32, #tpu.memory_space<vmem>>, %arg5: memref<64x128xf32, #tpu.memory_space<vmem>>, %arg6: memref<1x2x128xf32, #tpu.memory_space<vmem>>, %arg7: memref<1x2x128xf32, #tpu.memory_space<vmem>>) attributes {dimension_semantics = [#tpu.dimension_semantics<parallel>], iteration_bounds = array<i64: 2>, scalar_prefetch = 0 : i64, scratch_operands = 0 : i64, tpu.core_type = #tpu.core_type<tc>, window_params = [{transform_indices = @transform_0, window_bounds = array<i64: 64, 128>}, {pipeline_mode = #tpu.pipeline_mode<synchronous>, transform_indices = @transform_1, window_bounds = array<i64: 128, 128>}, {pipeline_mode = #tpu.pipeline_mode<synchronous>, transform_indices = @transform_2, window_bounds = array<i64: 128, 128>}, {transform_indices = @transform_3, window_bounds = array<i64: 64, 128>}, {transform_indices = @transform_4, window_bounds = array<i64: 64, 128>}, {transform_indices = @transform_5, window_bounds = array<i64: 1, 2, 128>}, {transform_indices = @transform_6, window_bounds = array<i64: 1, 2, 128>}]} {
    %c0 = arith.constant 0 : index
    %c0_0 = arith.constant 0 : index
    %0 = vector.load %arg1[%c0, %c0_0] : memref<64x128xf32, #tpu.memory_space<vmem>>, vector<64x128xf32>
    %1 = arith.truncf %0 : vector<64x128xf32> to vector<64x128xbf16>
    %c0_1 = arith.constant 0 : index
    %c0_2 = arith.constant 0 : index
    %2 = vector.load %arg2[%c0_1, %c0_2] : memref<128x128xbf16, #tpu.memory_space<vmem>>, vector<128x128xbf16>
    %cst = arith.constant dense<0.000000e+00> : vector<64x128xf32>
    %3 = tpu.matmul %1, %2, %cst {dimension_numbers = #tpu.dot_dimension_numbers<[1], [0], [0], [1], [0, 0, 1, 1], [], []>} : vector<64x128xbf16>, vector<128x128xbf16>, vector<64x128xf32> -> vector<64x128xf32>
    %c0_3 = arith.constant 0 : index
    %c0_4 = arith.constant 0 : index
    %4 = vector.load %arg3[%c0_3, %c0_4] : memref<128x128xbf16, #tpu.memory_space<vmem>>, vector<128x128xbf16>
    %cst_5 = arith.constant dense<0.000000e+00> : vector<64x128xf32>
    %5 = tpu.matmul %1, %4, %cst_5 {dimension_numbers = #tpu.dot_dimension_numbers<[1], [0], [0], [1], [0, 0, 1, 1], [], []>} : vector<64x128xbf16>, vector<128x128xbf16>, vector<64x128xf32> -> vector<64x128xf32>
    %c0_6 = arith.constant 0 : index
    %c0_7 = arith.constant 0 : index
    %6 = vector.load %arg4[%c0_6, %c0_7] : memref<64x128xf32, #tpu.memory_space<vmem>>, vector<64x128xf32>
    tpu.vector_store %arg4[%c0_6, %c0_7], %3 {strides = array<i32>} : memref<64x128xf32, #tpu.memory_space<vmem>>, vector<64x128xf32>,
    %c0_8 = arith.constant 0 : index
    %c0_9 = arith.constant 0 : index
    %7 = vector.load %arg5[%c0_8, %c0_9] : memref<64x128xf32, #tpu.memory_space<vmem>>, vector<64x128xf32>
    tpu.vector_store %arg5[%c0_8, %c0_9], %5 {strides = array<i32>} : memref<64x128xf32, #tpu.memory_space<vmem>>, vector<64x128xf32>,
    %cst_10 = arith.constant dense<0.000000e+00> : vector<128xf32>
    %8 = vector.multi_reduction <add>, %3, %cst_10 [0] : vector<64x128xf32> to vector<128xf32>
    %9 = vector.shape_cast %8 : vector<128xf32> to vector<1x128xf32>
    %10 = arith.mulf %3, %3 : vector<64x128xf32>
    %cst_11 = arith.constant dense<0.000000e+00> : vector<128xf32>
    %11 = vector.multi_reduction <add>, %10, %cst_11 [0] : vector<64x128xf32> to vector<128xf32>
    %12 = vector.shape_cast %11 : vector<128xf32> to vector<1x128xf32>
    %13 = tpu.concatenate %9, %12 in 0 : vector<1x128xf32>, vector<1x128xf32> -> vector<2x128xf32>
    %14 = vector.shape_cast %13 : vector<2x128xf32> to vector<1x2x128xf32>
    %c0_12 = arith.constant 0 : index
    %c0_13 = arith.constant 0 : index
    %c0_14 = arith.constant 0 : index
    %15 = vector.load %arg6[%c0_12, %c0_13, %c0_14] : memref<1x2x128xf32, #tpu.memory_space<vmem>>, vector<1x2x128xf32>
    tpu.vector_store %arg6[%c0_12, %c0_13, %c0_14], %14 {strides = array<i32>} : memref<1x2x128xf32, #tpu.memory_space<vmem>>, vector<1x2x128xf32>,
    %cst_15 = arith.constant dense<0.000000e+00> : vector<128xf32>
    %16 = vector.multi_reduction <add>, %5, %cst_15 [0] : vector<64x128xf32> to vector<128xf32>
    %17 = vector.shape_cast %16 : vector<128xf32> to vector<1x128xf32>
    %18 = arith.mulf %5, %5 : vector<64x128xf32>
    %cst_16 = arith.constant dense<0.000000e+00> : vector<128xf32>
    %19 = vector.multi_reduction <add>, %18, %cst_16 [0] : vector<64x128xf32> to vector<128xf32>
    %20 = vector.shape_cast %19 : vector<128xf32> to vector<1x128xf32>
    %21 = tpu.concatenate %17, %20 in 0 : vector<1x128xf32>, vector<1x128xf32> -> vector<2x128xf32>
    %22 = vector.shape_cast %21 : vector<2x128xf32> to vector<1x2x128xf32>
    %c0_17 = arith.constant 0 : index
    %c0_18 = arith.constant 0 : index
    %c0_19 = arith.constant 0 : index
    %23 = vector.load %arg7[%c0_17, %c0_18, %c0_19] : memref<1x2x128xf32, #tpu.memory_space<vmem>>, vector<1x2x128xf32>
    tpu.vector_store %arg7[%c0_17, %c0_18, %c0_19], %22 {strides = array<i32>} : memref<1x2x128xf32, #tpu.memory_space<vmem>>, vector<1x2x128xf32>,
    return
  }
  func.func @transform_0(%arg0: i32) -> (i32, i32) {
    %c0_i32 = arith.constant 0 : i32
    %c0_i32_0 = arith.constant 0 : i32
    return %arg0, %c0_i32 : i32, i32
  }
  func.func @transform_1(%arg0: i32) -> (i32, i32) {
    %c0_i32 = arith.constant 0 : i32
    %c0_i32_0 = arith.constant 0 : i32
    %c0_i32_1 = arith.constant 0 : i32
    return %c0_i32, %c0_i32_0 : i32, i32
  }
  func.func @transform_2(%arg0: i32) -> (i32, i32) {
    %c0_i32 = arith.constant 0 : i32
    %c0_i32_0 = arith.constant 0 : i32
    %c0_i32_1 = arith.constant 0 : i32
    return %c0_i32, %c0_i32_0 : i32, i32
  }
  func.func @transform_3(%arg0: i32) -> (i32, i32) {
    %c0_i32 = arith.constant 0 : i32
    %c0_i32_0 = arith.constant 0 : i32
    return %arg0, %c0_i32 : i32, i32
  }
  func.func @transform_4(%arg0: i32) -> (i32, i32) {
    %c0_i32 = arith.constant 0 : i32
    %c0_i32_0 = arith.constant 0 : i32
    return %arg0, %c0_i32 : i32, i32
  }
  func.func @transform_5(%arg0: i32) -> (i32, i32, i32) {
    %c0_i32 = arith.constant 0 : i32
    %c0_i32_0 = arith.constant 0 : i32
    %c0_i32_1 = arith.constant 0 : i32
    return %arg0, %c0_i32, %c0_i32_0 : i32, i32, i32
  }
  func.func @transform_6(%arg0: i32) -> (i32, i32, i32) {
    %c0_i32 = arith.constant 0 : i32
    %c0_i32_0 = arith.constant 0 : i32
    %c0_i32_1 = arith.constant 0 : i32
    return %arg0, %c0_i32, %c0_i32_0 : i32, i32, i32
  }
}

</mosaic_0001>

<llo_original>
// kernel: tpu_custom_call.1
$region0: #{tpu_custom_call.1}
  #allocation0 [shape = 'u32[]', space=smem, size = 0x4, offset = 0x4, fixed_abs, tag = 'smem constant byte address 0x4 - core index']
  #allocation1 [shape = 'u32[144,128]{1,0:T(1,128)}', space=vmem, size = 0x12000, scoped, tag = 'internal scratch']
  %s0 = inlined_call_operand.hbm [shape: f32[128,128], index: 0, kind: input, shape index: {}]
  %s1 = inlined_call_operand.hbm [shape: bf16[128,128], index: 1, kind: input, shape index: {}]
  %s2 = inlined_call_operand.hbm [shape: bf16[128,128], index: 2, kind: input, shape index: {}]
  %s3 = inlined_call_operand.hbm [shape: f32[128,128], index: 3, kind: output, shape index: {0}]
  %s4 = inlined_call_operand.hbm [shape: f32[128,128], index: 4, kind: output, shape index: {1}]
  %s5 = inlined_call_operand.hbm [shape: f32[2,2,128], index: 5, kind: output, shape index: {2}]
  %s6 = inlined_call_operand.hbm [shape: f32[2,2,128], index: 6, kind: output, shape index: {3}]
  %7 = xla_tuple %s3, %s4, %s5, %s6
  %s8 = sld [smem:[#allocation0]]
  $region81: #{tpu_custom_call.1} parent=0
    _
  %s10 = ssub.s32 1, %s8
  %s11 = scalar_select 0, %s10, %s8
  $region1: #{tpu_custom_call.1} parent=0
    #allocation2 [shape = 'u8[65536]{0}', space=vmem, size = 0x10000, scoped, tag = 'input window, operand 0']
    #allocation3 [shape = 's32[2]{0}', space=sflag, size = 0x8, scoped, tag = 'scoped memory for tpu_custom_call.1']
    #allocation4 [shape = 's32[2]{0}', space=sflag, size = 0x8, scoped, tag = 'scoped memory for tpu_custom_call.1']
    #allocation5 [shape = 'u8[32768]{0}', space=vmem, size = 0x8000, scoped, tag = 'input window, operand 1, single buffered']
    #allocation6 [shape = 's32[1]{0}', space=sflag, size = 0x4, scoped, tag = 'scoped memory for tpu_custom_call.1']
    #allocation7 [shape = 'u8[32768]{0}', space=vmem, size = 0x8000, scoped, tag = 'input window, operand 2, single buffered']
    #allocation8 [shape = 'u8[65536]{0}', space=vmem, size = 0x10000, scoped, tag = 'output window, operand 0']
    #allocation9 [shape = 'u8[65536]{0}', space=vmem, size = 0x10000, scoped, tag = 'output window, operand 1']
    #allocation10 [shape = 's32[2]{0}', space=sflag, size = 0x8, scoped, tag = 'scoped memory for tpu_custom_call.1']
    #allocation11 [shape = 'u8[2048]{0}', space=vmem, size = 0x800, scoped, tag = 'output window, operand 2']
    #allocation12 [shape = 'u8[2048]{0}', space=vmem, size = 0x800, scoped, tag = 'output window, operand 3']
    #allocation13 [shape = 's32[2]{0}', space=sflag, size = 0x8, scoped, tag = 'scoped memory for tpu_custom_call.1']
    %12 = vsyncpa [#allocation3], 0
    %s13 = scalar_lea.sflag [#allocation3], 1
    %14 = vsyncpa %s13, 0
    %15 = vsyncpa [#allocation6], 0
    %16 = vsyncpa [#allocation4], 0
    %s17 = scalar_lea.sflag [#allocation4], 1
    %18 = vsyncpa %s17, 0
    %19 = vsyncpa [#allocation10], 0
    %s20 = scalar_lea.sflag [#allocation10], 1
    %21 = vsyncpa %s20, 0
    %22 = vsyncpa [#allocation13], 0
    %s23 = scalar_lea.sflag [#allocation13], 1
    %24 = vsyncpa %s23, 0
    loop: start=0, step=1, limit=4
    $region2: #{tpu_custom_call.1} parent=1 // loop_pre_header
      _
    $region3: #{tpu_custom_call.1} parent=1 // loop_header
      %s26 = sphi 0, %s30
      %p27 = scmp.ge.s32.totalorder %s26, 4
      %s36 = sphi 0, %s38
      %s39 = sphi 0, %s36
      %s40 = sphi 0, %s39
      %s56 = sphi 0, %s40
      %s60 = sphi 0, %s60
      %s62 = sphi 0, %s60
      %s63 = sphi 0, %s62
      %s77 = sphi 0, %s63
      %s81 = sphi 0, %s81
      %s83 = sphi 0, %s81
      %s84 = sphi 0, %s83
      %s98 = sphi 0, %s84
      %s104 = sphi 0, %s106
      %s107 = sphi 0, %s104
      %s108 = sphi 0, %s107
      %s124 = sphi 0, %s108
      %s130 = sphi 0, %s132
      %s133 = sphi 0, %s130
      %s134 = sphi 0, %s133
      %s150 = sphi 0, %s134
      %s156 = sphi 0, %s158
      %s159 = sphi 0, %s156
      %s160 = sphi 0, %s159
      %s176 = sphi 0, %s160
      %s182 = sphi 0, %s184
      %s185 = sphi 0, %s182
      %s186 = sphi 0, %s185
      %s202 = sphi 0, %s186
    $region4: #{tpu_custom_call.1} parent=1 // loop_header_branch
      %29 = sbr.rel (%p27) target = $region8
    $region5: #{tpu_custom_call.1} parent=1 // loop_body
      %s31 = ssub.s32 %s26, 1
      %s32 = ssub.s32 %s26, 2
      %s33 = sadd.s32 %s26, 1
      %s34 = ssub.s32 %s26, %s33
      %p35 = scmp.eq.s32.totalorder %s34, 0
      %s37 = sadd.s32 %s36, 1
      %s38 = scalar_select %p35, %s36, %s37
      %p41 = pneg %p35
      %p42 = scmp.eq.s32.totalorder %s26, 1
      %p43 = por %p41, %p42
      %p44 = scmp.ne.s32.totalorder %s36, %s39
      %p45 = scmp.eq.s32.totalorder %s26, 0
      %p46 = por %p44, %p45
      %p47 = scmp.ne.s32.totalorder %s36, %s39
      %p48 = scmp.eq.s32.totalorder %s31, 1
      %p49 = por %p47, %p48
      %p50 = scmp.ne.s32.totalorder %s39, %s40
      %p51 = scmp.eq.s32.totalorder %s31, 0
      %p52 = por %p50, %p51
      %p53 = scmp.ne.s32.totalorder %s39, %s40
      %p54 = scmp.eq.s32.totalorder %s32, 1
      %p55 = por %p53, %p54
      %p57 = scmp.ne.s32.totalorder %s40, %s56
      %p58 = scmp.eq.s32.totalorder %s32, 0
      %p59 = por %p57, %p58
      %s61 = sadd.s32 %s60, 1
      %p64 = scmp.eq.s32.totalorder %s26, 1
      %p65 = scmp.ne.s32.totalorder %s60, %s62
      %p66 = scmp.eq.s32.totalorder %s26, 0
      %p67 = por %p65, %p66
      %p68 = scmp.ne.s32.totalorder %s60, %s62
      %p69 = scmp.eq.s32.totalorder %s31, 1
      %p70 = por %p68, %p69
      %p71 = scmp.ne.s32.totalorder %s62, %s63
      %p72 = scmp.eq.s32.totalorder %s31, 0
      %p73 = por %p71, %p72
      %p74 = scmp.ne.s32.totalorder %s62, %s63
      %p75 = scmp.eq.s32.totalorder %s32, 1
      %p76 = por %p74, %p75
      %p78 = scmp.ne.s32.totalorder %s63, %s77
      %p79 = scmp.eq.s32.totalorder %s32, 0
      %p80 = por %p78, %p79
      %s82 = sadd.s32 %s81, 1
      %p85 = scmp.eq.s32.totalorder %s26, 1
      %p86 = scmp.ne.s32.totalorder %s81, %s83
      %p87 = scmp.eq.s32.totalorder %s26, 0
      %p88 = por %p86, %p87
      %p89 = scmp.ne.s32.totalorder %s81, %s83
      %p90 = scmp.eq.s32.totalorder %s31, 1
      %p91 = por %p89, %p90
      %p92 = scmp.ne.s32.totalorder %s83, %s84
      %p93 = scmp.eq.s32.totalorder %s31, 0
      %p94 = por %p92, %p93
      %p95 = scmp.ne.s32.totalorder %s83, %s84
      %p96 = scmp.eq.s32.totalorder %s32, 1
      %p97 = por %p95, %p96
      %p99 = scmp.ne.s32.totalorder %s84, %s98
      %p100 = scmp.eq.s32.totalorder %s32, 0
      %p101 = por %p99, %p100
      %s102 = ssub.s32 %s26, %s33
      %p103 = scmp.eq.s32.totalorder %s102, 0
      %s105 = sadd.s32 %s104, 1
      %s106 = scalar_select %p103, %s104, %s105
      %p109 = pneg %p103
      %p110 = scmp.eq.s32.totalorder %s26, 1
      %p111 = por %p109, %p110
      %p112 = scmp.ne.s32.totalorder %s104, %s107
      %p113 = scmp.eq.s32.totalorder %s26, 0
      %p114 = por %p112, %p113
      %p115 = scmp.ne.s32.totalorder %s104, %s107
      %p116 = scmp.eq.s32.totalorder %s31, 1
      %p117 = por %p115, %p116
      %p118 = scmp.ne.s32.totalorder %s107, %s108
      %p119 = scmp.eq.s32.totalorder %s31, 0
      %p120 = por %p118, %p119
      %p121 = scmp.ne.s32.totalorder %s107, %s108
      %p122 = scmp.eq.s32.totalorder %s32, 1
      %p123 = por %p121, %p122
      %p125 = scmp.ne.s32.totalorder %s108, %s124
      %p126 = scmp.eq.s32.totalorder %s32, 0
      %p127 = por %p125, %p126
      %s128 = ssub.s32 %s26, %s33
      %p129 = scmp.eq.s32.totalorder %s128, 0
      %s131 = sadd.s32 %s130, 1
      %s132 = scalar_select %p129, %s130, %s131
      %p135 = pneg %p129
      %p136 = scmp.eq.s32.totalorder %s26, 1
      %p137 = por %p135, %p136
      %p138 = scmp.ne.s32.totalorder %s130, %s133
      %p139 = scmp.eq.s32.totalorder %s26, 0
      %p140 = por %p138, %p139
      %p141 = scmp.ne.s32.totalorder %s130, %s133
      %p142 = scmp.eq.s32.totalorder %s31, 1
      %p143 = por %p141, %p142
      %p144 = scmp.ne.s32.totalorder %s133, %s134
      %p145 = scmp.eq.s32.totalorder %s31, 0
      %p146 = por %p144, %p145
      %p147 = scmp.ne.s32.totalorder %s133, %s134
      %p148 = scmp.eq.s32.totalorder %s32, 1
      %p149 = por %p147, %p148
      %p151 = scmp.ne.s32.totalorder %s134, %s150
      %p152 = scmp.eq.s32.totalorder %s32, 0
      %p153 = por %p151, %p152
      %s154 = ssub.s32 %s26, %s33
      %p155 = scmp.eq.s32.totalorder %s154, 0
      %s157 = sadd.s32 %s156, 1
      %s158 = scalar_select %p155, %s156, %s157
      %p161 = pneg %p155
      %p162 = scmp.eq.s32.totalorder %s26, 1
      %p163 = por %p161, %p162
      %p164 = scmp.ne.s32.totalorder %s156, %s159
      %p165 = scmp.eq.s32.totalorder %s26, 0
      %p166 = por %p164, %p165
      %p167 = scmp.ne.s32.totalorder %s156, %s159
      %p168 = scmp.eq.s32.totalorder %s31, 1
      %p169 = por %p167, %p168
      %p170 = scmp.ne.s32.totalorder %s159, %s160
      %p171 = scmp.eq.s32.totalorder %s31, 0
      %p172 = por %p170, %p171
      %p173 = scmp.ne.s32.totalorder %s159, %s160
      %p174 = scmp.eq.s32.totalorder %s32, 1
      %p175 = por %p173, %p174
      %p177 = scmp.ne.s32.totalorder %s160, %s176
      %p178 = scmp.eq.s32.totalorder %s32, 0
      %p179 = por %p177, %p178
      %s180 = ssub.s32 %s26, %s33
      %p181 = scmp.eq.s32.totalorder %s180, 0
      %s183 = sadd.s32 %s182, 1
      %s184 = scalar_select %p181, %s182, %s183
      %p187 = pneg %p181
      %p188 = scmp.eq.s32.totalorder %s26, 1
      %p189 = por %p187, %p188
      %p190 = scmp.ne.s32.totalorder %s182, %s185
      %p191 = scmp.eq.s32.totalorder %s26, 0
      %p192 = por %p190, %p191
      %p193 = scmp.ne.s32.totalorder %s182, %s185
      %p194 = scmp.eq.s32.totalorder %s31, 1
      %p195 = por %p193, %p194
      %p196 = scmp.ne.s32.totalorder %s185, %s186
      %p197 = scmp.eq.s32.totalorder %s31, 0
      %p198 = por %p196, %p197
      %p199 = scmp.ne.s32.totalorder %s185, %s186
      %p200 = scmp.eq.s32.totalorder %s32, 1
      %p201 = por %p199, %p200
      %p203 = scmp.ne.s32.totalorder %s186, %s202
      %p204 = scmp.eq.s32.totalorder %s32, 0
      %p205 = por %p203, %p204
      %p206 = scmp.le.s32.totalorder 1, %s26
      %p207 = scmp.lt.s32.totalorder %s26, 3
      %p208 = pnand %p206, %p207
      %p209 = pneg %p208
      // Predicated region
      $region9: #{tpu_custom_call.1} parent=5 // pred_check
        _
      $region10: #{tpu_custom_call.1} parent=5 // pred_check_branch
        %211 = sbr.rel (%p208) target = $region12
      $region11: #{tpu_custom_call.1} parent=5 // pred_region
        %s212 = ssub.s32 %s26, 1
        // Predicated region
        $region13: #{tpu_custom_call.1} parent=11 // pred_check
          %p213 = pneg %p73
        $region14: #{tpu_custom_call.1} parent=11 // pred_check_branch
          %215 = sbr.rel (%p213) target = $region16
        $region15: #{tpu_custom_call.1} parent=11 // pred_region
          %s217 = ssub.s32 1024, 1024
          %218 = vsyncadd [#allocation6], %s217
          %s219 = sshll.u32 [#allocation5], 4
          %s220 = int_to_ptr.vmem [resolvable:$true] %s219
          %225 = dma.hbm_to_vmem [thread:$0]  %s1, 1024, %s220, [#allocation6], 64, 64, 4
        $region16: #{tpu_custom_call.1} parent=11 // pred_fallthru
          _
        // Predicated region
        $region17: #{tpu_custom_call.1} parent=11 // pred_check
          %p226 = pneg %p94
        $region18: #{tpu_custom_call.1} parent=11 // pred_check_branch
          %228 = sbr.rel (%p226) target = $region20
        $region19: #{tpu_custom_call.1} parent=11 // pred_region
          %s230 = ssub.s32 1024, 1024
          %231 = vsyncadd [#allocation6], %s230
          %s232 = sshll.u32 [#allocation7], 4
          %s233 = int_to_ptr.vmem [resolvable:$true] %s232
          %238 = dma.hbm_to_vmem [thread:$0]  %s2, 1024, %s233, [#allocation6], 64, 64, 4
        $region20: #{tpu_custom_call.1} parent=11 // pred_fallthru
          _
      $region12: #{tpu_custom_call.1} parent=5 // pred_fallthru
        _
      %p239 = scmp.lt.s32.totalorder %s26, 2
      // Predicated region
      $region21: #{tpu_custom_call.1} parent=5 // pred_check
        %p240 = pneg %p239
      $region22: #{tpu_custom_call.1} parent=5 // pred_check_branch
        %242 = sbr.rel (%p240) target = $region24
      $region23: #{tpu_custom_call.1} parent=5 // pred_region
        // Predicated region
        $region25: #{tpu_custom_call.1} parent=23 // pred_check
          %p243 = pneg %p46
        $region26: #{tpu_custom_call.1} parent=23 // pred_check_branch
          %245 = sbr.rel (%p243) target = $region28
        $region27: #{tpu_custom_call.1} parent=23 // pred_region
          %s246 = sand.u32 %s36, 1
          %s247 = scalar_lea.sflag [#allocation3], %s246
          %s248 = sand.u32 %s36, 1
          %s249 = smul.addr %s248, 64
          %s250 = scalar_lea.vmem [#allocation2], %s249
          %s251 = smul.u32 8, %s26
          %s253 = ssub.s32 1024, 1024
          %254 = vsyncadd %s247, %s253
          %s255 = smul.addr %s251, 128
          %s256 = scalar_lea.hbm %s0, %s255
          %s257 = sshll.u32 %s250, 4
          %s258 = int_to_ptr.vmem [resolvable:$true] %s257
          %263 = dma.hbm_to_vmem [thread:$0]  %s256, 1024, %s258, %s247, 128, 128, 8
        $region28: #{tpu_custom_call.1} parent=23 // pred_fallthru
          _
      $region24: #{tpu_custom_call.1} parent=5 // pred_fallthru
        _
      %p264 = scmp.le.s32.totalorder 1, %s26
      %p265 = scmp.lt.s32.totalorder %s26, 3
      %p266 = pnand %p264, %p265
      %p267 = pneg %p266
      // Predicated region
      $region29: #{tpu_custom_call.1} parent=5 // pred_check
        _
      $region30: #{tpu_custom_call.1} parent=5 // pred_check_branch
        %269 = sbr.rel (%p266) target = $region32
      $region31: #{tpu_custom_call.1} parent=5 // pred_region
        %s270 = ssub.s32 %s26, 1
        %s271 = sand.u32 %s39, 1
        %s272 = scalar_lea.sflag [#allocation3], %s271
        %s273 = sand.u32 %s39, 1
        %s274 = smul.addr %s273, 64
        %s275 = scalar_lea.vmem [#allocation2], %s274
        // Predicated region
        $region33: #{tpu_custom_call.1} parent=31 // pred_check
          %p276 = pneg %p52
        $region34: #{tpu_custom_call.1} parent=31 // pred_check_branch
          %278 = sbr.rel (%p276) target = $region36
        $region35: #{tpu_custom_call.1} parent=31 // pred_region
          %279 = dma.done %s272, 1024
        $region36: #{tpu_custom_call.1} parent=31 // pred_fallthru
          _
        // Predicated region
        $region37: #{tpu_custom_call.1} parent=31 // pred_check
          %p280 = pneg %p73
        $region38: #{tpu_custom_call.1} parent=31 // pred_check_branch
          %282 = sbr.rel (%p280) target = $region40
        $region39: #{tpu_custom_call.1} parent=31 // pred_region
          %283 = dma.done [#allocation6], 1024
        $region40: #{tpu_custom_call.1} parent=31 // pred_fallthru
          _
        // Predicated region
        $region41: #{tpu_custom_call.1} parent=31 // pred_check
          %p284 = pneg %p94
        $region42: #{tpu_custom_call.1} parent=31 // pred_check_branch
          %286 = sbr.rel (%p284) target = $region44
        $region43: #{tpu_custom_call.1} parent=31 // pred_region
          %287 = dma.done [#allocation6], 1024
        $region44: #{tpu_custom_call.1} parent=31 // pred_fallthru
          _
        %s288 = sand.u32 %s39, 1
        %s289 = scalar_lea.sflag [#allocation3], %s288
        %s290 = sand.u32 %s39, 1
        %s291 = smul.addr %s290, 64
        %s292 = scalar_lea.vmem [#allocation2], %s291
        %p293 = pneg %p52
        %p294 = pneg %p49
        %p295 = pneg %p73
        %p296 = pneg %p70
        %p297 = pneg %p94
        %p298 = pneg %p91
        %p299 = pneg %p120
        %p300 = pneg %p117
        %s301 = sand.u32 %s107, 1
        %s302 = scalar_lea.sflag [#allocation4], %s301
        %s303 = sand.u32 %s107, 1
        %s304 = smul.addr %s303, 64
        %s305 = scalar_lea.vmem [#allocation8], %s304
        %p306 = pneg %p146
        %p307 = pneg %p143
        %s308 = sand.u32 %s31, 1
        %s309 = scalar_lea.sflag [#allocation10], %s308
        %s310 = sand.u32 %s133, 1
        %s311 = smul.addr %s310, 64
        %s312 = scalar_lea.vmem [#allocation9], %s311
        %p313 = pneg %p172
        %p314 = pneg %p169
        %s315 = sand.u32 %s31, 1
        %s316 = scalar_lea.sflag [#allocation10], %s315
        %s317 = sand.u32 %s159, 1
        %s318 = smul.addr %s317, 2
        %s319 = scalar_lea.vmem [#allocation11], %s318
        %p320 = pneg %p198
        %p321 = pneg %p195
        %s322 = sand.u32 %s185, 1
        %s323 = scalar_lea.sflag [#allocation13], %s322
        %s324 = sand.u32 %s185, 1
        %s325 = smul.addr %s324, 2
        %s326 = scalar_lea.vmem [#allocation12], %s325
        %s327 = smul.u32 8, %s31
        %s328 = smul.u32 8, %s31
        %s329 = smul.u32 8, %s31
        %v331 = vld [vmem:[%s275] sm:$0xff]
        %v332 = vld [vmem:[%s275 + $0x8] sm:$0xff]
        %v333 = vld [vmem:[%s275 + $0x10] sm:$0xff]
        %v334 = vld [vmem:[%s275 + $0x18] sm:$0xff]
        %v335 = vld [vmem:[%s275 + $0x20] sm:$0xff]
        %v336 = vld [vmem:[%s275 + $0x28] sm:$0xff]
        %v337 = vld [vmem:[%s275 + $0x30] sm:$0xff]
        %v338 = vld [vmem:[%s275 + $0x38] sm:$0xff]
        %v339 = vpack.c.bf16 %v332, %v331
        %v340 = vpack.c.bf16 %v334, %v333
        %v341 = vpack.c.bf16 %v336, %v335
        %v342 = vpack.c.bf16 %v338, %v337
        %v343 = vld [vmem:[#allocation5] sm:$0xf]
        %v344 = vld [vmem:[#allocation5 + $0x4] sm:$0xf]
        %v345 = vld [vmem:[#allocation5 + $0x8] sm:$0xf]
        %v346 = vld [vmem:[#allocation5 + $0xc] sm:$0xf]
        %v347 = vld [vmem:[#allocation5 + $0x10] sm:$0xf]
        %v348 = vld [vmem:[#allocation5 + $0x14] sm:$0xf]
        %v349 = vld [vmem:[#allocation5 + $0x18] sm:$0xf]
        %v350 = vld [vmem:[#allocation5 + $0x1c] sm:$0xf]
        %v351 = vld [vmem:[#allocation5 + $0x20] sm:$0xf]
        %v352 = vld [vmem:[#allocation5 + $0x24] sm:$0xf]
        %v353 = vld [vmem:[#allocation5 + $0x28] sm:$0xf]
        %v354 = vld [vmem:[#allocation5 + $0x2c] sm:$0xf]
        %v355 = vld [vmem:[#allocation5 + $0x30] sm:$0xf]
        %v356 = vld [vmem:[#allocation5 + $0x34] sm:$0xf]
        %v357 = vld [vmem:[#allocation5 + $0x38] sm:$0xf]
        %v358 = vld [vmem:[#allocation5 + $0x3c] sm:$0xf]
        %v375 = vunpack.c.l.b16 %v343
        %v376 = vunpack.c.l.b16 %v344
        %v377 = vunpack.c.l.b16 %v345
        %v378 = vunpack.c.l.b16 %v346
        %v379 = vunpack.c.l.b16 %v347
        %v380 = vunpack.c.l.b16 %v348
        %v381 = vunpack.c.l.b16 %v349
        %v382 = vunpack.c.l.b16 %v350
        %v383 = vunpack.c.l.b16 %v351
        %v384 = vunpack.c.l.b16 %v352
        %v385 = vunpack.c.l.b16 %v353
        %v386 = vunpack.c.l.b16 %v354
        %v387 = vunpack.c.l.b16 %v355
        %v388 = vunpack.c.l.b16 %v356
        %v389 = vunpack.c.l.b16 %v357
        %v390 = vunpack.c.l.b16 %v358
        %v391 = vpack.c.b16 %v376, %v375
        %v392 = vpack.c.b16 %v378, %v377
        %v393 = vpack.c.b16 %v380, %v379
        %v394 = vpack.c.b16 %v382, %v381
        %v395 = vpack.c.b16 %v384, %v383
        %v396 = vpack.c.b16 %v386, %v385
        %v397 = vpack.c.b16 %v388, %v387
        %v398 = vpack.c.b16 %v390, %v389
        %407 = vmatprep.subr.bf16.mxu0 0
        %408 = vmatpush1.bf16.msra.mxu0 %v391
        %409 = vmatprep.subr.bf16.mxu0 0
        %410 = vmatpush1.bf16.msra.mxu0 %v392
        %411 = vmatprep.subr.bf16.mxu0 0
        %412 = vmatpush1.bf16.msra.mxu0 %v393
        %413 = vmatprep.subr.bf16.mxu0 0
        %414 = vmatpush1.bf16.msra.mxu0 %v394
        %415 = vmatprep.subr.bf16.mxu0 0
        %416 = vmatpush1.bf16.msra.mxu0 %v395
        %417 = vmatprep.subr.bf16.mxu0 0
        %418 = vmatpush1.bf16.msra.mxu0 %v396
        %419 = vmatprep.subr.bf16.mxu0 0
        %420 = vmatpush1.bf16.msra.mxu0 %v397
        %421 = vmatprep.subr.bf16.mxu0 0
        %422 = vmatpush1.bf16.msra.mxu0 %v398
        %423 = vmatprep.subr.bf16.mxu0 0
        %424 = vmatpush1.bf16.msra.mxu0 0
        %425 = vmatprep.subr.bf16.mxu0 0
        %426 = vmatpush1.bf16.msra.mxu0 0
        %427 = vmatprep.subr.bf16.mxu0 0
        %428 = vmatpush1.bf16.msra.mxu0 0
        %429 = vmatprep.subr.bf16.mxu0 0
        %430 = vmatpush1.bf16.msra.mxu0 0
        %431 = vmatprep.subr.bf16.mxu0 0
        %432 = vmatpush1.bf16.msra.mxu0 0
        %433 = vmatprep.subr.bf16.mxu0 0
        %434 = vmatpush1.bf16.msra.mxu0 0
        %435 = vmatprep.subr.bf16.mxu0 0
        %436 = vmatpush1.bf16.msra.mxu0 0
        %437 = vmatprep.subr.bf16.mxu0 0
        %438 = vmatpush1.bf16.msra.mxu0 0
        %439 = vmatprep.mubr.bf16.mxu0 0
        %440 = vmatmul.mubr.bf16.gmra.mrb[0].mxu0 %v339
        %v441 = vpop.f32.mrb[0].mxu0
        %v442 = vadd.f32 0.0, %v441
        %v443 = vpop.f32.mrb[0].mxu0
        %v444 = vpop.f32.mrb[0].mxu0
        %v445 = vadd.f32 0.0, %v444
        %v446 = vpop.f32.mrb[0].mxu0
        %447 = vmatprep.mubr.bf16.mxu0 0
        %448 = vmatmul.mubr.bf16.gmra.mrb[0].mxu0 %v340
        %v449 = vpop.f32.mrb[0].mxu0
        %v450 = vadd.f32 0.0, %v449
        %v451 = vpop.f32.mrb[0].mxu0
        %v452 = vpop.f32.mrb[0].mxu0
        %v453 = vadd.f32 0.0, %v452
        %v454 = vpop.f32.mrb[0].mxu0
        %455 = vmatprep.mubr.bf16.mxu0 0
        %456 = vmatmul.mubr.bf16.gmra.mrb[0].mxu0 %v341
        %v457 = vpop.f32.mrb[0].mxu0
        %v458 = vadd.f32 0.0, %v457
        %v459 = vpop.f32.mrb[0].mxu0
        %v460 = vpop.f32.mrb[0].mxu0
        %v461 = vadd.f32 0.0, %v460
        %v462 = vpop.f32.mrb[0].mxu0
        %463 = vmatprep.mubr.bf16.mxu0 0
        %464 = vmatmul.mubr.bf16.gmra.mrb[0].mxu0 %v342
        %v465 = vpop.f32.mrb[0].mxu0
        %v466 = vadd.f32 0.0, %v465
        %v467 = vpop.f32.mrb[0].mxu0
        %v468 = vpop.f32.mrb[0].mxu0
        %v469 = vadd.f32 0.0, %v468
        %v470 = vpop.f32.mrb[0].mxu0
        %471 = vdwg.mxu0
        %v472 = vld [vmem:[#allocation7] sm:$0xf]
        %v473 = vld [vmem:[#allocation7 + $0x4] sm:$0xf]
        %v474 = vld [vmem:[#allocation7 + $0x8] sm:$0xf]
        %v475 = vld [vmem:[#allocation7 + $0xc] sm:$0xf]
        %v476 = vld [vmem:[#allocation7 + $0x10] sm:$0xf]
        %v477 = vld [vmem:[#allocation7 + $0x14] sm:$0xf]
        %v478 = vld [vmem:[#allocation7 + $0x18] sm:$0xf]
        %v479 = vld [vmem:[#allocation7 + $0x1c] sm:$0xf]
        %v480 = vld [vmem:[#allocation7 + $0x20] sm:$0xf]
        %v481 = vld [vmem:[#allocation7 + $0x24] sm:$0xf]
        %v482 = vld [vmem:[#allocation7 + $0x28] sm:$0xf]
        %v483 = vld [vmem:[#allocation7 + $0x2c] sm:$0xf]
        %v484 = vld [vmem:[#allocation7 + $0x30] sm:$0xf]
        %v485 = vld [vmem:[#allocation7 + $0x34] sm:$0xf]
        %v486 = vld [vmem:[#allocation7 + $0x38] sm:$0xf]
        %v487 = vld [vmem:[#allocation7 + $0x3c] sm:$0xf]
        %v504 = vunpack.c.l.b16 %v472
        %v505 = vunpack.c.l.b16 %v473
        %v506 = vunpack.c.l.b16 %v474
        %v507 = vunpack.c.l.b16 %v475
        %v508 = vunpack.c.l.b16 %v476
        %v509 = vunpack.c.l.b16 %v477
        %v510 = vunpack.c.l.b16 %v478
        %v511 = vunpack.c.l.b16 %v479
        %v512 = vunpack.c.l.b16 %v480
        %v513 = vunpack.c.l.b16 %v481
        %v514 = vunpack.c.l.b16 %v482
        %v515 = vunpack.c.l.b16 %v483
        %v516 = vunpack.c.l.b16 %v484
        %v517 = vunpack.c.l.b16 %v485
        %v518 = vunpack.c.l.b16 %v486
        %v519 = vunpack.c.l.b16 %v487
        %v520 = vpack.c.b16 %v505, %v504
        %v521 = vpack.c.b16 %v507, %v506
        %v522 = vpack.c.b16 %v509, %v508
        %v523 = vpack.c.b16 %v511, %v510
        %v524 = vpack.c.b16 %v513, %v512
        %v525 = vpack.c.b16 %v515, %v514
        %v526 = vpack.c.b16 %v517, %v516
        %v527 = vpack.c.b16 %v519, %v518
        %536 = vmatprep.subr.bf16.mxu0 0
        %537 = vmatpush1.bf16.msra.mxu0 %v520
        %538 = vmatprep.subr.bf16.mxu0 0
        %539 = vmatpush1.bf16.msra.mxu0 %v521
        %540 = vmatprep.subr.bf16.mxu0 0
        %541 = vmatpush1.bf16.msra.mxu0 %v522
        %542 = vmatprep.subr.bf16.mxu0 0
        %543 = vmatpush1.bf16.msra.mxu0 %v523
        %544 = vmatprep.subr.bf16.mxu0 0
        %545 = vmatpush1.bf16.msra.mxu0 %v524
        %546 = vmatprep.subr.bf16.mxu0 0
        %547 = vmatpush1.bf16.msra.mxu0 %v525
        %548 = vmatprep.subr.bf16.mxu0 0
        %549 = vmatpush1.bf16.msra.mxu0 %v526
        %550 = vmatprep.subr.bf16.mxu0 0
        %551 = vmatpush1.bf16.msra.mxu0 %v527
        %552 = vmatprep.subr.bf16.mxu0 0
        %553 = vmatpush1.bf16.msra.mxu0 0
        %554 = vmatprep.subr.bf16.mxu0 0
        %555 = vmatpush1.bf16.msra.mxu0 0
        %556 = vmatprep.subr.bf16.mxu0 0
        %557 = vmatpush1.bf16.msra.mxu0 0
        %558 = vmatprep.subr.bf16.mxu0 0
        %559 = vmatpush1.bf16.msra.mxu0 0
        %560 = vmatprep.subr.bf16.mxu0 0
        %561 = vmatpush1.bf16.msra.mxu0 0
        %562 = vmatprep.subr.bf16.mxu0 0
        %563 = vmatpush1.bf16.msra.mxu0 0
        %564 = vmatprep.subr.bf16.mxu0 0
        %565 = vmatpush1.bf16.msra.mxu0 0
        %566 = vmatprep.subr.bf16.mxu0 0
        %567 = vmatpush1.bf16.msra.mxu0 0
        %568 = vmatprep.mubr.bf16.mxu0 0
        %569 = vmatmul.mubr.bf16.gmra.mrb[0].mxu0 %v339
        %v570 = vpop.f32.mrb[0].mxu0
        %v571 = vadd.f32 0.0, %v570
        %v572 = vpop.f32.mrb[0].mxu0
        %v573 = vpop.f32.mrb[0].mxu0
        %v574 = vadd.f32 0.0, %v573
        %v575 = vpop.f32.mrb[0].mxu0
        %576 = vmatprep.mubr.bf16.mxu0 0
        %577 = vmatmul.mubr.bf16.gmra.mrb[0].mxu0 %v340
        %v578 = vpop.f32.mrb[0].mxu0
        %v579 = vadd.f32 0.0, %v578
        %v580 = vpop.f32.mrb[0].mxu0
        %v581 = vpop.f32.mrb[0].mxu0
        %v582 = vadd.f32 0.0, %v581
        %v583 = vpop.f32.mrb[0].mxu0
        %584 = vmatprep.mubr.bf16.mxu0 0
        %585 = vmatmul.mubr.bf16.gmra.mrb[0].mxu0 %v341
        %v586 = vpop.f32.mrb[0].mxu0
        %v587 = vadd.f32 0.0, %v586
        %v588 = vpop.f32.mrb[0].mxu0
        %v589 = vpop.f32.mrb[0].mxu0
        %v590 = vadd.f32 0.0, %v589
        %v591 = vpop.f32.mrb[0].mxu0
        %592 = vmatprep.mubr.bf16.mxu0 0
        %593 = vmatmul.mubr.bf16.gmra.mrb[0].mxu0 %v342
        %v594 = vpop.f32.mrb[0].mxu0
        %v595 = vadd.f32 0.0, %v594
        %v596 = vpop.f32.mrb[0].mxu0
        %v597 = vpop.f32.mrb[0].mxu0
        %v598 = vadd.f32 0.0, %v597
        %v599 = vpop.f32.mrb[0].mxu0
        %600 = vdwg.mxu0
        %601 = vst [vmem:[%s305] sm:$0xff] %v442
        %602 = vst [vmem:[%s305 + $0x8] sm:$0xff] %v445
        %603 = vst [vmem:[%s305 + $0x10] sm:$0xff] %v450
        %604 = vst [vmem:[%s305 + $0x18] sm:$0xff] %v453
        %605 = vst [vmem:[%s305 + $0x20] sm:$0xff] %v458
        %606 = vst [vmem:[%s305 + $0x28] sm:$0xff] %v461
        %607 = vst [vmem:[%s305 + $0x30] sm:$0xff] %v466
        %608 = vst [vmem:[%s305 + $0x38] sm:$0xff] %v469
        %609 = vst [vmem:[%s312] sm:$0xff] %v571
        %610 = vst [vmem:[%s312 + $0x8] sm:$0xff] %v574
        %611 = vst [vmem:[%s312 + $0x10] sm:$0xff] %v579
        %612 = vst [vmem:[%s312 + $0x18] sm:$0xff] %v582
        %613 = vst [vmem:[%s312 + $0x20] sm:$0xff] %v587
        %614 = vst [vmem:[%s312 + $0x28] sm:$0xff] %v590
        %615 = vst [vmem:[%s312 + $0x30] sm:$0xff] %v595
        %616 = vst [vmem:[%s312 + $0x38] sm:$0xff] %v598
        %v617 = vadd.f32 %v442, %v445
        %v618 = vadd.f32 %v617, %v450
        %v619 = vadd.f32 %v618, %v453
        %v620 = vadd.f32 %v619, %v458
        %v621 = vadd.f32 %v620, %v461
        %v622 = vadd.f32 %v621, %v466
        %v623 = vadd.f32 %v622, %v469
        %v624 = vrot.slane %v623, 4
        %v625 = vadd.f32 %v623, %v624
        %v626 = vrot.slane %v625, 2
        %v627 = vadd.f32 %v625, %v626
        %v628 = vrot.slane %v627, 1
        %v629 = vadd.f32 %v627, %v628
        %v630 = vmul.f32 %v442, %v442
        %v631 = vmul.f32 %v445, %v445
        %v632 = vmul.f32 %v450, %v450
        %v633 = vmul.f32 %v453, %v453
        %v634 = vmul.f32 %v458, %v458
        %v635 = vmul.f32 %v461, %v461
        %v636 = vmul.f32 %v466, %v466
        %v637 = vmul.f32 %v469, %v469
        %v638 = vadd.f32 %v630, %v631
        %v639 = vadd.f32 %v638, %v632
        %v640 = vadd.f32 %v639, %v633
        %v641 = vadd.f32 %v640, %v634
        %v642 = vadd.f32 %v641, %v635
        %v643 = vadd.f32 %v642, %v636
        %v644 = vadd.f32 %v643, %v637
        %v645 = vrot.slane %v644, 4
        %v646 = vadd.f32 %v644, %v645
        %v647 = vrot.slane %v646, 2
        %v648 = vadd.f32 %v646, %v647
        %v649 = vrot.slane %v648, 1
        %v650 = vadd.f32 %v648, %v649
        %vm651 = vcmask 1040384
        %v652 = vsel %vm651, %v629, %v650
        %653 = vst [vmem:[%s319] sm:$0x3] %v652
        %v654 = vadd.f32 %v571, %v574
        %v655 = vadd.f32 %v654, %v579
        %v656 = vadd.f32 %v655, %v582
        %v657 = vadd.f32 %v656, %v587
        %v658 = vadd.f32 %v657, %v590
        %v659 = vadd.f32 %v658, %v595
        %v660 = vadd.f32 %v659, %v598
        %v661 = vrot.slane %v660, 4
        %v662 = vadd.f32 %v660, %v661
        %v663 = vrot.slane %v662, 2
        %v664 = vadd.f32 %v662, %v663
        %v665 = vrot.slane %v664, 1
        %v666 = vadd.f32 %v664, %v665
        %v667 = vmul.f32 %v571, %v571
        %v668 = vmul.f32 %v574, %v574
        %v669 = vmul.f32 %v579, %v579
        %v670 = vmul.f32 %v582, %v582
        %v671 = vmul.f32 %v587, %v587
        %v672 = vmul.f32 %v590, %v590
        %v673 = vmul.f32 %v595, %v595
        %v674 = vmul.f32 %v598, %v598
        %v675 = vadd.f32 %v667, %v668
        %v676 = vadd.f32 %v675, %v669
        %v677 = vadd.f32 %v676, %v670
        %v678 = vadd.f32 %v677, %v671
        %v679 = vadd.f32 %v678, %v672
        %v680 = vadd.f32 %v679, %v673
        %v681 = vadd.f32 %v680, %v674
        %v682 = vrot.slane %v681, 4
        %v683 = vadd.f32 %v681, %v682
        %v684 = vrot.slane %v683, 2
        %v685 = vadd.f32 %v683, %v684
        %v686 = vrot.slane %v685, 1
        %v687 = vadd.f32 %v685, %v686
        %v688 = vsel %vm651, %v666, %v687
        %689 = vst [vmem:[%s326] sm:$0x3] %v688
        %s690 = sand.u32 %s107, 1
        %s691 = scalar_lea.sflag [#allocation4], %s690
        %s692 = sand.u32 %s107, 1
        %s693 = smul.addr %s692, 64
        %s694 = scalar_lea.vmem [#allocation8], %s693
        %s695 = sand.u32 %s31, 1
        %s696 = scalar_lea.sflag [#allocation10], %s695
        %s697 = sand.u32 %s133, 1
        %s698 = smul.addr %s697, 64
        %s699 = scalar_lea.vmem [#allocation9], %s698
        %s700 = sand.u32 %s31, 1
        %s701 = scalar_lea.sflag [#allocation10], %s700
        %s702 = sand.u32 %s159, 1
        %s703 = smul.addr %s702, 2
        %s704 = scalar_lea.vmem [#allocation11], %s703
        %s705 = sand.u32 %s185, 1
        %s706 = scalar_lea.sflag [#allocation13], %s705
        %s707 = sand.u32 %s185, 1
        %s708 = smul.addr %s707, 2
        %s709 = scalar_lea.vmem [#allocation12], %s708
        // Predicated region
        $region45: #{tpu_custom_call.1} parent=31 // pred_check
          %p710 = pneg %p117
        $region46: #{tpu_custom_call.1} parent=31 // pred_check_branch
          %712 = sbr.rel (%p710) target = $region48
        $region47: #{tpu_custom_call.1} parent=31 // pred_region
          %s713 = smul.u32 8, %s31
          %s715 = ssub.s32 1024, 1024
          %716 = vsyncadd %s691, %s715
          %s717 = smul.addr %s713, 128
          %s718 = scalar_lea.hbm %s3, %s717
          %s719 = sshll.u32 %s694, 4
          %s720 = int_to_ptr.vmem [resolvable:$true] %s719
          %725 = dma.vmem_to_hbm [thread:$0]  %s720, 1024, %s718, %s691, 128, 128, 8
        $region48: #{tpu_custom_call.1} parent=31 // pred_fallthru
          _
        // Predicated region
        $region49: #{tpu_custom_call.1} parent=31 // pred_check
          %p726 = pneg %p143
        $region50: #{tpu_custom_call.1} parent=31 // pred_check_branch
          %728 = sbr.rel (%p726) target = $region52
        $region51: #{tpu_custom_call.1} parent=31 // pred_region
          %s729 = smul.u32 8, %s31
          %s731 = ssub.s32 1024, 1024
          %732 = vsyncadd %s696, %s731
          %s733 = smul.addr %s729, 128
          %s734 = scalar_lea.hbm %s4, %s733
          %s735 = sshll.u32 %s699, 4
          %s736 = int_to_ptr.vmem [resolvable:$true] %s735
          %741 = dma.vmem_to_hbm [thread:$0]  %s736, 1024, %s734, %s696, 128, 128, 8
        $region52: #{tpu_custom_call.1} parent=31 // pred_fallthru
          _
        // Predicated region
        $region53: #{tpu_custom_call.1} parent=31 // pred_check
          %p742 = pneg %p169
        $region54: #{tpu_custom_call.1} parent=31 // pred_check_branch
          %744 = sbr.rel (%p742) target = $region56
        $region55: #{tpu_custom_call.1} parent=31 // pred_region
          %s746 = ssub.s32 32, 32
          %747 = vsyncadd %s701, %s746
          %s748 = smul.addr %s31, 32
          %s749 = scalar_lea.hbm %s5, %s748
          %s751 = sshll.u32 %s704, 4
          %s752 = int_to_ptr.vmem [resolvable:$true] %s751
          %754 = dma.vmem_to_hbm [thread:$0]  %s752, 32, %s749, %s701
        $region56: #{tpu_custom_call.1} parent=31 // pred_fallthru
          _
        // Predicated region
        $region57: #{tpu_custom_call.1} parent=31 // pred_check
          %p755 = pneg %p195
        $region58: #{tpu_custom_call.1} parent=31 // pred_check_branch
          %757 = sbr.rel (%p755) target = $region60
        $region59: #{tpu_custom_call.1} parent=31 // pred_region
          %s759 = ssub.s32 32, 32
          %760 = vsyncadd %s706, %s759
          %s761 = smul.addr %s31, 32
          %s762 = scalar_lea.hbm %s6, %s761
          %s764 = sshll.u32 %s709, 4
          %s765 = int_to_ptr.vmem [resolvable:$true] %s764
          %767 = dma.vmem_to_hbm [thread:$0]  %s765, 32, %s762, %s706
        $region60: #{tpu_custom_call.1} parent=31 // pred_fallthru
          _
      $region32: #{tpu_custom_call.1} parent=5 // pred_fallthru
        _
      %p768 = scmp.le.s32.totalorder 2, %s26
      // Predicated region
      $region61: #{tpu_custom_call.1} parent=5 // pred_check
        %p769 = pneg %p768
      $region62: #{tpu_custom_call.1} parent=5 // pred_check_branch
        %771 = sbr.rel (%p769) target = $region64
      $region63: #{tpu_custom_call.1} parent=5 // pred_region
        %s772 = ssub.s32 %s26, 2
        // Predicated region
        $region65: #{tpu_custom_call.1} parent=63 // pred_check
          %p773 = pneg %p123
        $region66: #{tpu_custom_call.1} parent=63 // pred_check_branch
          %775 = sbr.rel (%p773) target = $region68
        $region67: #{tpu_custom_call.1} parent=63 // pred_region
          %s776 = sand.u32 %s108, 1
          %s777 = scalar_lea.sflag [#allocation4], %s776
          %s778 = sand.u32 %s108, 1
          %s779 = smul.addr %s778, 64
          %s780 = scalar_lea.vmem [#allocation8], %s779
          %781 = dma.done %s777, 1024
        $region68: #{tpu_custom_call.1} parent=63 // pred_fallthru
          _
        // Predicated region
        $region69: #{tpu_custom_call.1} parent=63 // pred_check
          %p782 = pneg %p149
        $region70: #{tpu_custom_call.1} parent=63 // pred_check_branch
          %784 = sbr.rel (%p782) target = $region72
        $region71: #{tpu_custom_call.1} parent=63 // pred_region
          %s785 = sand.u32 %s32, 1
          %s786 = scalar_lea.sflag [#allocation10], %s785
          %s787 = sand.u32 %s134, 1
          %s788 = smul.addr %s787, 64
          %s789 = scalar_lea.vmem [#allocation9], %s788
          %790 = dma.done %s786, 1024
        $region72: #{tpu_custom_call.1} parent=63 // pred_fallthru
          _
        // Predicated region
        $region73: #{tpu_custom_call.1} parent=63 // pred_check
          %p791 = pneg %p175
        $region74: #{tpu_custom_call.1} parent=63 // pred_check_branch
          %793 = sbr.rel (%p791) target = $region76
        $region75: #{tpu_custom_call.1} parent=63 // pred_region
          %s794 = sand.u32 %s32, 1
          %s795 = scalar_lea.sflag [#allocation10], %s794
          %s796 = sand.u32 %s160, 1
          %s797 = smul.addr %s796, 2
          %s798 = scalar_lea.vmem [#allocation11], %s797
          %799 = dma.done %s795, 32
        $region76: #{tpu_custom_call.1} parent=63 // pred_fallthru
          _
        // Predicated region
        $region77: #{tpu_custom_call.1} parent=63 // pred_check
          %p800 = pneg %p201
        $region78: #{tpu_custom_call.1} parent=63 // pred_check_branch
          %802 = sbr.rel (%p800) target = $region80
        $region79: #{tpu_custom_call.1} parent=63 // pred_region
          %s803 = sand.u32 %s186, 1
          %s804 = scalar_lea.sflag [#allocation13], %s803
          %s805 = sand.u32 %s186, 1
          %s806 = smul.addr %s805, 2
          %s807 = scalar_lea.vmem [#allocation12], %s806
          %808 = dma.done %s804, 32
        $region80: #{tpu_custom_call.1} parent=63 // pred_fallthru
          _
      $region64: #{tpu_custom_call.1} parent=5 // pred_fallthru
        _
    $region6: #{tpu_custom_call.1} parent=1 // loop_footer
      %s30 = sadd.s32 1, %s26
    $region7: #{tpu_custom_call.1} parent=1 // loop_footer_branch
      %25 = sbr.rel target = $region3
    $region8: #{tpu_custom_call.1} parent=1 // loop_exit
      _
    %809 = vsyncpa [#allocation3], 1
    %s810 = scalar_lea.sflag [#allocation3], 1
    %811 = vsyncpa %s810, 1
    %812 = vsyncpa [#allocation6], 1
    %813 = vsyncpa [#allocation4], 1
    %s814 = scalar_lea.sflag [#allocation4], 1
    %815 = vsyncpa %s814, 1
    %816 = vsyncpa [#allocation10], 1
    %s817 = scalar_lea.sflag [#allocation10], 1
    %818 = vsyncpa %s817, 1
    %819 = vsyncpa [#allocation13], 1
    %s820 = scalar_lea.sflag [#allocation13], 1
    %821 = vsyncpa %s820, 1

</llo_original>
